<compile_context>
chip_gen: v6e
topology: v6e:2x2x1
jax: 0.10.0
libtpu: 0.0.40
codegen_flags: <defaults>
</compile_context>

<pallas_src>
import jax
import jax.numpy as jnp
from jax.experimental import pallas as pl
from jax.experimental.pallas import tpu as pltpu

IN_DIM = 100
HID_DIM = 1024
OUT_DIM = 2
OUT_PAD = 128   # fc2 weight padded 2 -> 128 lanes (MXU operand only)


def _round_up(n, m):
    return ((n + m - 1) // m) * m


def _make_kernel(bf16_elementwise):
    def kernel(x_ref, w1_ref, b1_ref, w2_ref, b2_ref, o_ref):
        # x_ref : (TB, IN_DIM)        f32 or bf16 (streamed per grid step)
        # w1_ref: (IN_DIM, HID_DIM)   bf16 (resident: constant block index)
        # b1_ref: (1, HID_DIM)        f32
        # w2_ref: (HID_DIM, OUT_PAD)  bf16 (resident)
        # b2_ref: (1, OUT_PAD)        f32
        # o_ref : (TB, OUT_DIM)       f32  (only the 2 real columns hit HBM)
        x = x_ref[...].astype(jnp.bfloat16)
        h32 = jnp.dot(x, w1_ref[...], preferred_element_type=jnp.float32)
        if bf16_elementwise:
            # v6e/v7x: native bf16 VPU -> keep the big (TB,1024) intermediate
            # in bf16 for the bias-add / ReLU and feed it straight to the MXU.
            h = jnp.maximum(h32.astype(jnp.bfloat16)
                            + b1_ref[...].astype(jnp.bfloat16), 0.0)
        else:
            # v5e (no bf16 VPU): elementwise in f32, cast only for the MXU.
            h = jnp.maximum(h32 + b1_ref[...], 0.0).astype(jnp.bfloat16)
        # TODO(synk): dropout implemented as identity (eval-mode semantics);
        # a training-mode dropout would use pltpu.prng_seed/prng_random_bits.
        o = jnp.dot(h, w2_ref[...], preferred_element_type=jnp.float32) + b2_ref[...]
        o_ref[...] = o[:, :OUT_DIM]              # masked narrow store, 8 B/row
    return kernel


def prepare_params(w1, b1, w2, b2):
    """One-time prep: transpose, pad fc2 output axis, cast weights to bf16.

    w1: (1024, 100), b1: (1024,), w2: (2, 1024), b2: (2,)  (torch Linear layout)
    """
    w1_t = jnp.asarray(w1, jnp.float32).T.astype(jnp.bfloat16)           # (100, 1024)
    b1_r = jnp.asarray(b1, jnp.float32).reshape(1, HID_DIM)              # (1, 1024)
    w2_t = jnp.zeros((HID_DIM, OUT_PAD), jnp.bfloat16).at[:, :OUT_DIM].set(
        jnp.asarray(w2, jnp.float32).T.astype(jnp.bfloat16))             # (1024, 128)
    b2_p = jnp.zeros((1, OUT_PAD), jnp.float32).at[:, :OUT_DIM].set(
        jnp.asarray(b2, jnp.float32))                                    # (1, 128)
    return w1_t, b1_r, w2_t, b2_p


def _default_bf16_elementwise():
    """bf16 elementwise on v6e/v7x; f32 on v5e/older (no bf16 VPU ALUs)."""
    try:
        kind = jax.devices()[0].device_kind.lower()
    except Exception:
        return True
    for old in ("v2", "v3", "v4", "v5 lite", "v5e", "v5litepod"):
        if old in kind:
            return False
    return True


def _choose_tb(B, tb):
    """Pick the batch tile: big enough to amortize per-step overhead, but
    producing >= 2 grid steps when possible so v7x's two TensorCores both work."""
    if B <= 8:
        return B                                  # single full-extent block
    half = _round_up(pl.cdiv(B, 2), 8)            # >= 2 grid steps target
    return max(8, min(tb, half))


def widemlp_forward(x, prepared, tb=1024, bf16_elementwise=None):
    """x: (B, 100) f32 or bf16; prepared = prepare_params(...). Returns (B, 2) f32."""
    w1_t, b1_r, w2_t, b2_p = prepared
    B = x.shape[0]
    if bf16_elementwise is None:
        bf16_elementwise = _default_bf16_elementwise()

    TB = _choose_tb(B, tb)
    grid = (pl.cdiv(B, TB),)                      # ragged tail block is masked

    out = pl.pallas_call(
        _make_kernel(bf16_elementwise),
        out_shape=jax.ShapeDtypeStruct((B, OUT_DIM), jnp.float32),
        grid=grid,
        in_specs=[
            pl.BlockSpec((TB, IN_DIM), lambda i: (i, 0)),        # streamed x tile
            pl.BlockSpec((IN_DIM, HID_DIM), lambda i: (0, 0)),   # resident weights
            pl.BlockSpec((1, HID_DIM), lambda i: (0, 0)),
            pl.BlockSpec((HID_DIM, OUT_PAD), lambda i: (0, 0)),
            pl.BlockSpec((1, OUT_PAD), lambda i: (0, 0)),
        ],
        out_specs=pl.BlockSpec((TB, OUT_DIM), lambda i: (i, 0)),  # real 2-col output
        compiler_params=pltpu.CompilerParams(
            dimension_semantics=("parallel",),
            vmem_limit_bytes=32 << 20,            # plenty even at TB=2048 bf16 h
        ),
    )(x, w1_t, b1_r, w2_t, b2_p)

    return out


def init_params(key):
    """Deterministic init matching torch.nn.Linear shapes."""
    k1, k2, k3, k4 = jax.random.split(key, 4)
    bound1 = 1.0 / (IN_DIM ** 0.5)
    bound2 = 1.0 / (HID_DIM ** 0.5)
    w1 = jax.random.uniform(k1, (HID_DIM, IN_DIM), jnp.float32, -bound1, bound1)
    b1 = jax.random.uniform(k2, (HID_DIM,), jnp.float32, -bound1, bound1)
    w2 = jax.random.uniform(k3, (OUT_DIM, HID_DIM), jnp.float32, -bound2, bound2)
    b2 = jax.random.uniform(k4, (OUT_DIM,), jnp.float32, -bound2, bound2)
    return w1, b1, w2, b2


def _ref_forward(x, w1, b1, w2, b2):
    return jnp.maximum(x @ w1.T + b1, 0.0) @ w2.T + b2


if __name__ == "__main__":
    key = jax.random.PRNGKey(0)
    kx, kx2, kp = jax.random.split(key, 3)
    w1, b1, w2, b2 = init_params(kp)
    prepared = prepare_params(w1, b1, w2, b2)

    # Small batch: single full-extent block (no masking needed).
    B = 2
    x = jax.random.normal(kx, (B, IN_DIM), jnp.float32)
    out = jax.block_until_ready(widemlp_forward(x, prepared))
    ref = _ref_forward(x, w1, b1, w2, b2)
    assert out.shape == (B, OUT_DIM)
    assert jnp.allclose(out, ref, atol=3e-2, rtol=3e-2)

    # Multi-tile ragged grid path: weights resident, batch streamed, masked tail.
    B2 = 520
    x2 = jax.random.normal(kx2, (B2, IN_DIM), jnp.float32)
    out2 = jax.block_until_ready(widemlp_forward(x2, prepared, tb=256))
    ref2 = _ref_forward(x2, w1, b1, w2, b2)
    assert out2.shape == (B2, OUT_DIM)
    assert jnp.allclose(out2, ref2, atol=3e-2, rtol=3e-2)

    # Also exercise the f32-elementwise (v5e) kernel variant for coverage.
    out3 = jax.block_until_ready(
        widemlp_forward(x2, prepared, tb=256, bf16_elementwise=False))
    assert jnp.allclose(out3, ref2, atol=3e-2, rtol=3e-2)

    print("KERNEL_OK")
</pallas_src>

<mosaic_0001>
module attributes {stable_mosaic.version = 11 : i64} {
  func.func @kernel(%arg0: i32, %arg1: memref<2x100xf32, #tpu.memory_space<vmem>>, %arg2: memref<100x1024xbf16, #tpu.memory_space<vmem>>, %arg3: memref<1x1024xf32, #tpu.memory_space<vmem>>, %arg4: memref<1024x128xbf16, #tpu.memory_space<vmem>>, %arg5: memref<1x128xf32, #tpu.memory_space<vmem>>, %arg6: memref<2x2xf32, #tpu.memory_space<vmem>>) attributes {dimension_semantics = [#tpu.dimension_semantics<parallel>], iteration_bounds = array<i64: 1>, scalar_prefetch = 0 : i64, scratch_operands = 0 : i64, tpu.core_type = #tpu.core_type<tc>, window_params = [{transform_indices = @transform_0, window_bounds = array<i64: 2, 100>}, {pipeline_mode = #tpu.pipeline_mode<synchronous>, transform_indices = @transform_1, window_bounds = array<i64: 100, 1024>}, {pipeline_mode = #tpu.pipeline_mode<synchronous>, transform_indices = @transform_2, window_bounds = array<i64: 1, 1024>}, {pipeline_mode = #tpu.pipeline_mode<synchronous>, transform_indices = @transform_3, window_bounds = array<i64: 1024, 128>}, {pipeline_mode = #tpu.pipeline_mode<synchronous>, transform_indices = @transform_4, window_bounds = array<i64: 1, 128>}, {transform_indices = @transform_5, window_bounds = array<i64: 2, 2>}]} {
    %c0 = arith.constant 0 : index
    %c0_0 = arith.constant 0 : index
    %0 = vector.load %arg1[%c0, %c0_0] : memref<2x100xf32, #tpu.memory_space<vmem>>, vector<2x100xf32>
    %1 = arith.truncf %0 : vector<2x100xf32> to vector<2x100xbf16>
    %c0_1 = arith.constant 0 : index
    %c0_2 = arith.constant 0 : index
    %2 = vector.load %arg2[%c0_1, %c0_2] : memref<100x1024xbf16, #tpu.memory_space<vmem>>, vector<100x1024xbf16>
    %cst = arith.constant dense<0.000000e+00> : vector<2x1024xf32>
    %3 = tpu.matmul %1, %2, %cst {dimension_numbers = #tpu.dot_dimension_numbers<[1], [0], [0], [1], [0, 0, 1, 1], [], []>} : vector<2x100xbf16>, vector<100x1024xbf16>, vector<2x1024xf32> -> vector<2x1024xf32>
    %4 = arith.truncf %3 : vector<2x1024xf32> to vector<2x1024xbf16>
    %c0_3 = arith.constant 0 : index
    %c0_4 = arith.constant 0 : index
    %5 = vector.load %arg3[%c0_3, %c0_4] : memref<1x1024xf32, #tpu.memory_space<vmem>>, vector<1x1024xf32>
    %6 = arith.truncf %5 : vector<1x1024xf32> to vector<1x1024xbf16>
    %7 = vector.broadcast %6 : vector<1x1024xbf16> to vector<2x1024xbf16>
    %8 = arith.addf %4, %7 : vector<2x1024xbf16>
    %cst_5 = arith.constant 0.000000e+00 : bf16
    %9 = vector.broadcast %cst_5 : bf16 to vector<2x1024xbf16>
    %10 = arith.maximumf %8, %9 : vector<2x1024xbf16>
    %c0_6 = arith.constant 0 : index
    %c0_7 = arith.constant 0 : index
    %11 = vector.load %arg4[%c0_6, %c0_7] : memref<1024x128xbf16, #tpu.memory_space<vmem>>, vector<1024x128xbf16>
    %cst_8 = arith.constant dense<0.000000e+00> : vector<2x128xf32>
    %12 = tpu.matmul %10, %11, %cst_8 {dimension_numbers = #tpu.dot_dimension_numbers<[1], [0], [0], [1], [0, 0, 1, 1], [], []>} : vector<2x1024xbf16>, vector<1024x128xbf16>, vector<2x128xf32> -> vector<2x128xf32>
    %c0_9 = arith.constant 0 : index
    %c0_10 = arith.constant 0 : index
    %13 = vector.load %arg5[%c0_9, %c0_10] : memref<1x128xf32, #tpu.memory_space<vmem>>, vector<1x128xf32>
    %14 = vector.broadcast %13 : vector<1x128xf32> to vector<2x128xf32>
    %15 = arith.addf %12, %14 : vector<2x128xf32>
    %16 = vector.extract_strided_slice %15 {offsets = [0, 0], sizes = [2, 2], strides = [1, 1]} : vector<2x128xf32> to vector<2x2xf32>
    %c0_11 = arith.constant 0 : index
    %c0_12 = arith.constant 0 : index
    %17 = vector.load %arg6[%c0_11, %c0_12] : memref<2x2xf32, #tpu.memory_space<vmem>>, vector<2x2xf32>
    tpu.vector_store %arg6[%c0_11, %c0_12], %16 {strides = array<i32>} : memref<2x2xf32, #tpu.memory_space<vmem>>, vector<2x2xf32>,
    return
  }
  func.func @transform_0(%arg0: i32) -> (i32, i32) {
    %c0_i32 = arith.constant 0 : i32
    %c0_i32_0 = arith.constant 0 : i32
    return %arg0, %c0_i32 : i32, i32
  }
  func.func @transform_1(%arg0: i32) -> (i32, i32) {
    %c0_i32 = arith.constant 0 : i32
    %c0_i32_0 = arith.constant 0 : i32
    %c0_i32_1 = arith.constant 0 : i32
    return %c0_i32, %c0_i32_0 : i32, i32
  }
  func.func @transform_2(%arg0: i32) -> (i32, i32) {
    %c0_i32 = arith.constant 0 : i32
    %c0_i32_0 = arith.constant 0 : i32
    %c0_i32_1 = arith.constant 0 : i32
    return %c0_i32, %c0_i32_0 : i32, i32
  }
  func.func @transform_3(%arg0: i32) -> (i32, i32) {
    %c0_i32 = arith.constant 0 : i32
    %c0_i32_0 = arith.constant 0 : i32
    %c0_i32_1 = arith.constant 0 : i32
    return %c0_i32, %c0_i32_0 : i32, i32
  }
  func.func @transform_4(%arg0: i32) -> (i32, i32) {
    %c0_i32 = arith.constant 0 : i32
    %c0_i32_0 = arith.constant 0 : i32
    %c0_i32_1 = arith.constant 0 : i32
    return %c0_i32, %c0_i32_0 : i32, i32
  }
  func.func @transform_5(%arg0: i32) -> (i32, i32) {
    %c0_i32 = arith.constant 0 : i32
    %c0_i32_0 = arith.constant 0 : i32
    return %arg0, %c0_i32 : i32, i32
  }
}

</mosaic_0001>

<llo_original>
// kernel: tpu_custom_call.1
$region0: #{tpu_custom_call.1}
  #allocation0 [shape = 'u32[]', space=smem, size = 0x4, offset = 0x4, fixed_abs, tag = 'smem constant byte address 0x4 - core index']
  #allocation1 [shape = 'u32[144,128]{1,0:T(1,128)}', space=vmem, size = 0x12000, scoped, tag = 'internal scratch']
  %s0 = inlined_call_operand.hbm [shape: f32[2,100], index: 0, kind: input, shape index: {}]
  %s1 = inlined_call_operand.hbm [shape: bf16[100,1024], index: 1, kind: input, shape index: {}]
  %s2 = inlined_call_operand.hbm [shape: f32[1,1024], index: 2, kind: input, shape index: {}]
  %s3 = inlined_call_operand.hbm [shape: bf16[1024,128], index: 3, kind: input, shape index: {}]
  %s4 = inlined_call_operand.vmem [shape: f32[1,128], index: 4, kind: input, shape index: {}]
  %s5 = inlined_call_operand.hbm [shape: f32[2,2], index: 5, kind: output, shape index: {}]
  %s6 = sld [smem:[#allocation0]]
  $region46: #{tpu_custom_call.1} parent=0
    _
  %s8 = ssub.s32 1, %s6
  %s9 = scalar_select 0, %s8, %s6
  $region1: #{tpu_custom_call.1} parent=0
    #allocation2 [shape = 'u8[1024]{0}', space=vmem, size = 0x400, scoped, tag = 'input window, operand 0, single buffered']
    #allocation3 [shape = 's32[1]{0}', space=sflag, size = 0x4, scoped, tag = 'scoped memory for tpu_custom_call.1']
    #allocation4 [shape = 's32[1]{0}', space=sflag, size = 0x4, scoped, tag = 'scoped memory for tpu_custom_call.1']
    #allocation5 [shape = 'u8[212992]{0}', space=vmem, size = 0x34000, scoped, tag = 'input window, operand 1, single buffered']
    #allocation6 [shape = 's32[1]{0}', space=sflag, size = 0x4, scoped, tag = 'scoped memory for tpu_custom_call.1']
    #allocation7 [shape = 'u8[4096]{0}', space=vmem, size = 0x1000, scoped, tag = 'input window, operand 2, single buffered']
    #allocation8 [shape = 'u8[262144]{0}', space=vmem, size = 0x40000, scoped, tag = 'input window, operand 3, single buffered']
    #allocation9 [shape = 's32[1]{0}', space=sflag, size = 0x4, scoped, tag = 'scoped memory for tpu_custom_call.1']
    #allocation10 [shape = 'u8[1024]{0}', space=vmem, size = 0x400, scoped, tag = 'output window, operand 0, single buffered']
    %10 = vsyncpa [#allocation3], 0
    %11 = vsyncpa [#allocation6], 0
    %12 = vsyncpa [#allocation9], 0
    %13 = vsyncpa [#allocation4], 0
    // Predicated region
    $region2: #{tpu_custom_call.1} parent=1 // pred_check
      _
    $region3: #{tpu_custom_call.1} parent=1 // pred_check_branch
      %15 = sbr.rel (0) target = $region5
    $region4: #{tpu_custom_call.1} parent=1 // pred_region
      %s17 = ssub.s32 32, 32
      %18 = vsyncadd [#allocation3], %s17
      %s20 = sshll.u32 [#allocation2], 4
      %s21 = int_to_ptr.vmem [resolvable:$true] %s20
      %23 = dma.hbm_to_vmem [thread:$0]  %s0, 32, %s21, [#allocation3]
    $region5: #{tpu_custom_call.1} parent=1 // pred_fallthru
      _
    // Predicated region
    $region6: #{tpu_custom_call.1} parent=1 // pred_check
      _
    $region7: #{tpu_custom_call.1} parent=1 // pred_check_branch
      %25 = sbr.rel (0) target = $region9
    $region8: #{tpu_custom_call.1} parent=1 // pred_region
      %s27 = ssub.s32 6656, 6656
      %28 = vsyncadd [#allocation6], %s27
      %s29 = sshll.u32 [#allocation5], 4
      %s30 = int_to_ptr.vmem [resolvable:$true] %s29
      %35 = dma.hbm_to_vmem [thread:$0]  %s1, 6656, %s30, [#allocation6], 512, 512, 32
    $region9: #{tpu_custom_call.1} parent=1 // pred_fallthru
      _
    // Predicated region
    $region10: #{tpu_custom_call.1} parent=1 // pred_check
      _
    $region11: #{tpu_custom_call.1} parent=1 // pred_check_branch
      %37 = sbr.rel (0) target = $region13
    $region12: #{tpu_custom_call.1} parent=1 // pred_region
      %s39 = ssub.s32 128, 128
      %40 = vsyncadd [#allocation6], %s39
      %s42 = sshll.u32 [#allocation7], 4
      %s43 = int_to_ptr.vmem [resolvable:$true] %s42
      %45 = dma.hbm_to_vmem [thread:$0]  %s2, 128, %s43, [#allocation6]
    $region13: #{tpu_custom_call.1} parent=1 // pred_fallthru
      _
    // Predicated region
    $region14: #{tpu_custom_call.1} parent=1 // pred_check
      _
    $region15: #{tpu_custom_call.1} parent=1 // pred_check_branch
      %47 = sbr.rel (0) target = $region17
    $region16: #{tpu_custom_call.1} parent=1 // pred_region
      %s49 = ssub.s32 8192, 8192
      %50 = vsyncadd [#allocation9], %s49
      %s51 = sshll.u32 [#allocation8], 4
      %s52 = int_to_ptr.vmem [resolvable:$true] %s51
      %57 = dma.hbm_to_vmem [thread:$0]  %s3, 8192, %s52, [#allocation9], 64, 64, 4
    $region17: #{tpu_custom_call.1} parent=1 // pred_fallthru
      _
    // Predicated region
    $region18: #{tpu_custom_call.1} parent=1 // pred_check
      _
    $region19: #{tpu_custom_call.1} parent=1 // pred_check_branch
      %59 = sbr.rel (0) target = $region21
    $region20: #{tpu_custom_call.1} parent=1 // pred_region
      _
    $region21: #{tpu_custom_call.1} parent=1 // pred_fallthru
      _
    // Predicated region
    $region22: #{tpu_custom_call.1} parent=1 // pred_check
      _
    $region23: #{tpu_custom_call.1} parent=1 // pred_check_branch
      %61 = sbr.rel (0) target = $region25
    $region24: #{tpu_custom_call.1} parent=1 // pred_region
      %62 = dma.done [#allocation3], 32
    $region25: #{tpu_custom_call.1} parent=1 // pred_fallthru
      _
    // Predicated region
    $region26: #{tpu_custom_call.1} parent=1 // pred_check
      _
    $region27: #{tpu_custom_call.1} parent=1 // pred_check_branch
      %64 = sbr.rel (0) target = $region29
    $region28: #{tpu_custom_call.1} parent=1 // pred_region
      %65 = dma.done [#allocation6], 6656
    $region29: #{tpu_custom_call.1} parent=1 // pred_fallthru
      _
    // Predicated region
    $region30: #{tpu_custom_call.1} parent=1 // pred_check
      _
    $region31: #{tpu_custom_call.1} parent=1 // pred_check_branch
      %67 = sbr.rel (0) target = $region33
    $region32: #{tpu_custom_call.1} parent=1 // pred_region
      %68 = dma.done [#allocation6], 128
    $region33: #{tpu_custom_call.1} parent=1 // pred_fallthru
      _
    // Predicated region
    $region34: #{tpu_custom_call.1} parent=1 // pred_check
      _
    $region35: #{tpu_custom_call.1} parent=1 // pred_check_branch
      %70 = sbr.rel (0) target = $region37
    $region36: #{tpu_custom_call.1} parent=1 // pred_region
      %71 = dma.done [#allocation9], 8192
    $region37: #{tpu_custom_call.1} parent=1 // pred_fallthru
      _
    %v73 = vld [vmem:[#allocation2] sm:$0x3]
    %v74 = vpack.c.bf16 %v73, %v73
    %v75 = vld [vmem:[#allocation5] sm:$0xff]
    %v76 = vld [vmem:[#allocation5 + $0x8] sm:$0xff]
    %v77 = vld [vmem:[#allocation5 + $0x10] sm:$0xff]
    %v78 = vld [vmem:[#allocation5 + $0x18] sm:$0xff]
    %v79 = vld [vmem:[#allocation5 + $0x20] sm:$0xff]
    %v80 = vld [vmem:[#allocation5 + $0x28] sm:$0xff]
    %v81 = vld [vmem:[#allocation5 + $0x30] sm:$0xff]
    %v82 = vld [vmem:[#allocation5 + $0x38] sm:$0xff]
    %v83 = vld [vmem:[#allocation5 + $0x40] sm:$0xff]
    %v84 = vld [vmem:[#allocation5 + $0x48] sm:$0xff]
    %v85 = vld [vmem:[#allocation5 + $0x50] sm:$0xff]
    %v86 = vld [vmem:[#allocation5 + $0x58] sm:$0xff]
    %v87 = vld [vmem:[#allocation5 + $0x60] sm:$0xff]
    %v88 = vld [vmem:[#allocation5 + $0x68] sm:$0xff]
    %v89 = vld [vmem:[#allocation5 + $0x70] sm:$0xff]
    %v90 = vld [vmem:[#allocation5 + $0x78] sm:$0xff]
    %v91 = vld [vmem:[#allocation5 + $0x80] sm:$0xff]
    %v92 = vld [vmem:[#allocation5 + $0x88] sm:$0xff]
    %v93 = vld [vmem:[#allocation5 + $0x90] sm:$0xff]
    %v94 = vld [vmem:[#allocation5 + $0x98] sm:$0xff]
    %v95 = vld [vmem:[#allocation5 + $0xa0] sm:$0xff]
    %v96 = vld [vmem:[#allocation5 + $0xa8] sm:$0xff]
    %v97 = vld [vmem:[#allocation5 + $0xb0] sm:$0xff]
    %v98 = vld [vmem:[#allocation5 + $0xb8] sm:$0xff]
    %v99 = vld [vmem:[#allocation5 + $0xc0] sm:$0xff]
    %v100 = vld [vmem:[#allocation5 + $0xc8] sm:$0xff]
    %v101 = vld [vmem:[#allocation5 + $0xd0] sm:$0xff]
    %v102 = vld [vmem:[#allocation5 + $0xd8] sm:$0xff]
    %v103 = vld [vmem:[#allocation5 + $0xe0] sm:$0xff]
    %v104 = vld [vmem:[#allocation5 + $0xe8] sm:$0xff]
    %v105 = vld [vmem:[#allocation5 + $0xf0] sm:$0xff]
    %v106 = vld [vmem:[#allocation5 + $0xf8] sm:$0xff]
    %v107 = vld [vmem:[#allocation5 + $0x100] sm:$0xff]
    %v108 = vld [vmem:[#allocation5 + $0x108] sm:$0xff]
    %v109 = vld [vmem:[#allocation5 + $0x110] sm:$0xff]
    %v110 = vld [vmem:[#allocation5 + $0x118] sm:$0xff]
    %v111 = vld [vmem:[#allocation5 + $0x120] sm:$0xff]
    %v112 = vld [vmem:[#allocation5 + $0x128] sm:$0xff]
    %v113 = vld [vmem:[#allocation5 + $0x130] sm:$0xff]
    %v114 = vld [vmem:[#allocation5 + $0x138] sm:$0xff]
    %v115 = vld [vmem:[#allocation5 + $0x140] sm:$0xff]
    %v116 = vld [vmem:[#allocation5 + $0x148] sm:$0xff]
    %v117 = vld [vmem:[#allocation5 + $0x150] sm:$0xff]
    %v118 = vld [vmem:[#allocation5 + $0x158] sm:$0xff]
    %v119 = vld [vmem:[#allocation5 + $0x160] sm:$0xff]
    %v120 = vld [vmem:[#allocation5 + $0x168] sm:$0xff]
    %v121 = vld [vmem:[#allocation5 + $0x170] sm:$0xff]
    %v122 = vld [vmem:[#allocation5 + $0x178] sm:$0xff]
    %v123 = vld [vmem:[#allocation5 + $0x180] sm:$0x33]
    %v124 = vld [vmem:[#allocation5 + $0x188] sm:$0x33]
    %v125 = vld [vmem:[#allocation5 + $0x190] sm:$0x33]
    %v126 = vld [vmem:[#allocation5 + $0x198] sm:$0x33]
    %v179 = vunpack.c.l.b16 %v75
    %v180 = vunpack.c.h.b16 %v75
    %v181 = vunpack.c.l.b16 %v76
    %v182 = vunpack.c.h.b16 %v76
    %v183 = vunpack.c.l.b16 %v77
    %v184 = vunpack.c.h.b16 %v77
    %v185 = vunpack.c.l.b16 %v78
    %v186 = vunpack.c.h.b16 %v78
    %v187 = vunpack.c.l.b16 %v79
    %v188 = vunpack.c.h.b16 %v79
    %v189 = vunpack.c.l.b16 %v80
    %v190 = vunpack.c.h.b16 %v80
    %v191 = vunpack.c.l.b16 %v81
    %v192 = vunpack.c.h.b16 %v81
    %v193 = vunpack.c.l.b16 %v82
    %v194 = vunpack.c.h.b16 %v82
    %v195 = vunpack.c.l.b16 %v83
    %v196 = vunpack.c.h.b16 %v83
    %v197 = vunpack.c.l.b16 %v84
    %v198 = vunpack.c.h.b16 %v84
    %v199 = vunpack.c.l.b16 %v85
    %v200 = vunpack.c.h.b16 %v85
    %v201 = vunpack.c.l.b16 %v86
    %v202 = vunpack.c.h.b16 %v86
    %v203 = vunpack.c.l.b16 %v87
    %v204 = vunpack.c.h.b16 %v87
    %v205 = vunpack.c.l.b16 %v88
    %v206 = vunpack.c.h.b16 %v88
    %v207 = vunpack.c.l.b16 %v89
    %v208 = vunpack.c.h.b16 %v89
    %v209 = vunpack.c.l.b16 %v90
    %v210 = vunpack.c.h.b16 %v90
    %v211 = vunpack.c.l.b16 %v91
    %v212 = vunpack.c.h.b16 %v91
    %v213 = vunpack.c.l.b16 %v92
    %v214 = vunpack.c.h.b16 %v92
    %v215 = vunpack.c.l.b16 %v93
    %v216 = vunpack.c.h.b16 %v93
    %v217 = vunpack.c.l.b16 %v94
    %v218 = vunpack.c.h.b16 %v94
    %v219 = vunpack.c.l.b16 %v95
    %v220 = vunpack.c.h.b16 %v95
    %v221 = vunpack.c.l.b16 %v96
    %v222 = vunpack.c.h.b16 %v96
    %v223 = vunpack.c.l.b16 %v97
    %v224 = vunpack.c.h.b16 %v97
    %v225 = vunpack.c.l.b16 %v98
    %v226 = vunpack.c.h.b16 %v98
    %v227 = vunpack.c.l.b16 %v99
    %v228 = vunpack.c.h.b16 %v99
    %v229 = vunpack.c.l.b16 %v100
    %v230 = vunpack.c.h.b16 %v100
    %v231 = vunpack.c.l.b16 %v101
    %v232 = vunpack.c.h.b16 %v101
    %v233 = vunpack.c.l.b16 %v102
    %v234 = vunpack.c.h.b16 %v102
    %v235 = vunpack.c.l.b16 %v103
    %v236 = vunpack.c.h.b16 %v103
    %v237 = vunpack.c.l.b16 %v104
    %v238 = vunpack.c.h.b16 %v104
    %v239 = vunpack.c.l.b16 %v105
    %v240 = vunpack.c.h.b16 %v105
    %v241 = vunpack.c.l.b16 %v106
    %v242 = vunpack.c.h.b16 %v106
    %v243 = vunpack.c.l.b16 %v107
    %v244 = vunpack.c.h.b16 %v107
    %v245 = vunpack.c.l.b16 %v108
    %v246 = vunpack.c.h.b16 %v108
    %v247 = vunpack.c.l.b16 %v109
    %v248 = vunpack.c.h.b16 %v109
    %v249 = vunpack.c.l.b16 %v110
    %v250 = vunpack.c.h.b16 %v110
    %v251 = vunpack.c.l.b16 %v111
    %v252 = vunpack.c.h.b16 %v111
    %v253 = vunpack.c.l.b16 %v112
    %v254 = vunpack.c.h.b16 %v112
    %v255 = vunpack.c.l.b16 %v113
    %v256 = vunpack.c.h.b16 %v113
    %v257 = vunpack.c.l.b16 %v114
    %v258 = vunpack.c.h.b16 %v114
    %v259 = vunpack.c.l.b16 %v115
    %v260 = vunpack.c.h.b16 %v115
    %v261 = vunpack.c.l.b16 %v116
    %v262 = vunpack.c.h.b16 %v116
    %v263 = vunpack.c.l.b16 %v117
    %v264 = vunpack.c.h.b16 %v117
    %v265 = vunpack.c.l.b16 %v118
    %v266 = vunpack.c.h.b16 %v118
    %v267 = vunpack.c.l.b16 %v119
    %v268 = vunpack.c.h.b16 %v119
    %v269 = vunpack.c.l.b16 %v120
    %v270 = vunpack.c.h.b16 %v120
    %v271 = vunpack.c.l.b16 %v121
    %v272 = vunpack.c.h.b16 %v121
    %v273 = vunpack.c.l.b16 %v122
    %v274 = vunpack.c.h.b16 %v122
    %v275 = vunpack.c.l.b16 %v123
    %v276 = vunpack.c.h.b16 %v123
    %v277 = vunpack.c.l.b16 %v124
    %v278 = vunpack.c.h.b16 %v124
    %v279 = vunpack.c.l.b16 %v125
    %v280 = vunpack.c.h.b16 %v125
    %v281 = vunpack.c.l.b16 %v126
    %v282 = vunpack.c.h.b16 %v126
    %v283 = vpack.c.b16 %v187, %v179
    %v284 = vpack.c.b16 %v188, %v180
    %v285 = vpack.c.b16 %v189, %v181
    %v286 = vpack.c.b16 %v190, %v182
    %v287 = vpack.c.b16 %v191, %v183
    %v288 = vpack.c.b16 %v192, %v184
    %v289 = vpack.c.b16 %v193, %v185
    %v290 = vpack.c.b16 %v194, %v186
    %v291 = vpack.c.b16 %v203, %v195
    %v292 = vpack.c.b16 %v204, %v196
    %v293 = vpack.c.b16 %v205, %v197
    %v294 = vpack.c.b16 %v206, %v198
    %v295 = vpack.c.b16 %v207, %v199
    %v296 = vpack.c.b16 %v208, %v200
    %v297 = vpack.c.b16 %v209, %v201
    %v298 = vpack.c.b16 %v210, %v202
    %v299 = vpack.c.b16 %v219, %v211
    %v300 = vpack.c.b16 %v220, %v212
    %v301 = vpack.c.b16 %v221, %v213
    %v302 = vpack.c.b16 %v222, %v214
    %v303 = vpack.c.b16 %v223, %v215
    %v304 = vpack.c.b16 %v224, %v216
    %v305 = vpack.c.b16 %v225, %v217
    %v306 = vpack.c.b16 %v226, %v218
    %v307 = vpack.c.b16 %v235, %v227
    %v308 = vpack.c.b16 %v236, %v228
    %v309 = vpack.c.b16 %v237, %v229
    %v310 = vpack.c.b16 %v238, %v230
    %v311 = vpack.c.b16 %v239, %v231
    %v312 = vpack.c.b16 %v240, %v232
    %v313 = vpack.c.b16 %v241, %v233
    %v314 = vpack.c.b16 %v242, %v234
    %v315 = vpack.c.b16 %v251, %v243
    %v316 = vpack.c.b16 %v252, %v244
    %v317 = vpack.c.b16 %v253, %v245
    %v318 = vpack.c.b16 %v254, %v246
    %v319 = vpack.c.b16 %v255, %v247
    %v320 = vpack.c.b16 %v256, %v248
    %v321 = vpack.c.b16 %v257, %v249
    %v322 = vpack.c.b16 %v258, %v250
    %v323 = vpack.c.b16 %v267, %v259
    %v324 = vpack.c.b16 %v268, %v260
    %v325 = vpack.c.b16 %v269, %v261
    %v326 = vpack.c.b16 %v270, %v262
    %v327 = vpack.c.b16 %v271, %v263
    %v328 = vpack.c.b16 %v272, %v264
    %v329 = vpack.c.b16 %v273, %v265
    %v330 = vpack.c.b16 %v274, %v266
    %v331 = vpack.c.b16 %v275, %v275
    %v332 = vpack.c.b16 %v276, %v276
    %v333 = vpack.c.b16 %v277, %v277
    %v334 = vpack.c.b16 %v278, %v278
    %v335 = vpack.c.b16 %v279, %v279
    %v336 = vpack.c.b16 %v280, %v280
    %v337 = vpack.c.b16 %v281, %v281
    %v338 = vpack.c.b16 %v282, %v282
    %vm387 = vcmask 818176
    %v389 = vsel %vm387, %v74, 0
    %vm391 = vcmask 1041408
    %v393 = vsel %vm391, %v331, 0
    %v396 = vsel %vm391, %v332, 0
    %v399 = vsel %vm391, %v333, 0
    %v402 = vsel %vm391, %v334, 0
    %v405 = vsel %vm391, %v335, 0
    %v408 = vsel %vm391, %v336, 0
    %v411 = vsel %vm391, %v337, 0
    %v414 = vsel %vm391, %v338, 0
    %416 = vmatprep.subr.bf16.mxu0 0
    %417 = vmatpush1.bf16.msra.mxu0 0
    %418 = vmatprep.subr.bf16.mxu0 %v396
    %419 = vmatpush1.bf16.msra.mxu0 %v393
    %420 = vmatprep.subr.bf16.mxu0 %v324
    %421 = vmatpush1.bf16.msra.mxu0 %v323
    %422 = vmatprep.subr.bf16.mxu0 %v316
    %423 = vmatpush1.bf16.msra.mxu0 %v315
    %424 = vmatprep.subr.bf16.mxu0 %v308
    %425 = vmatpush1.bf16.msra.mxu0 %v307
    %426 = vmatprep.subr.bf16.mxu0 %v300
    %427 = vmatpush1.bf16.msra.mxu0 %v299
    %428 = vmatprep.subr.bf16.mxu0 %v292
    %429 = vmatpush1.bf16.msra.mxu0 %v291
    %430 = vmatprep.subr.bf16.mxu0 %v284
    %431 = vmatpush1.bf16.msra.mxu0 %v283
    %432 = vmatprep.subr.bf16.mxu0 0
    %433 = vmatpush2.bf16.msra.mxu0 0
    %434 = vmatprep.subr.bf16.mxu0 0
    %435 = vmatpush2.bf16.msra.mxu0 0
    %436 = vmatprep.subr.bf16.mxu0 0
    %437 = vmatpush2.bf16.msra.mxu0 0
    %438 = vmatprep.subr.bf16.mxu0 0
    %439 = vmatpush2.bf16.msra.mxu0 0
    %440 = vmatprep.subr.bf16.mxu0 0
    %441 = vmatpush2.bf16.msra.mxu0 0
    %442 = vmatprep.subr.bf16.mxu0 0
    %443 = vmatpush2.bf16.msra.mxu0 0
    %444 = vmatprep.subr.bf16.mxu0 0
    %445 = vmatpush2.bf16.msra.mxu0 0
    %446 = vmatprep.subr.bf16.mxu0 0
    %447 = vmatpush2.bf16.msra.mxu0 0
    %448 = vmatprep.mubr.bf16.mxu0 0
    %449 = vmatmul.mubr.bf16.gmra.mxu0 %v389
    %v450 = vpop.f32.mrf.mxu0
    %v451 = vadd.f32 0.0, %v450
    %v452 = vpop.f32.mrf.mxu0
    %v453 = vadd.f32 0.0, %v452
    %v454 = vpop.f32.mrf.mxu0
    %v455 = vpop.f32.mrf.mxu0
    %456 = vdwg.mxu0
    %457 = vmatprep.subr.bf16.mxu0 0
    %458 = vmatpush1.bf16.msra.mxu0 0
    %459 = vmatprep.subr.bf16.mxu0 %v402
    %460 = vmatpush1.bf16.msra.mxu0 %v399
    %461 = vmatprep.subr.bf16.mxu0 %v326
    %462 = vmatpush1.bf16.msra.mxu0 %v325
    %463 = vmatprep.subr.bf16.mxu0 %v318
    %464 = vmatpush1.bf16.msra.mxu0 %v317
    %465 = vmatprep.subr.bf16.mxu0 %v310
    %466 = vmatpush1.bf16.msra.mxu0 %v309
    %467 = vmatprep.subr.bf16.mxu0 %v302
    %468 = vmatpush1.bf16.msra.mxu0 %v301
    %469 = vmatprep.subr.bf16.mxu0 %v294
    %470 = vmatpush1.bf16.msra.mxu0 %v293
    %471 = vmatprep.subr.bf16.mxu0 %v286
    %472 = vmatpush1.bf16.msra.mxu0 %v285
    %473 = vmatprep.subr.bf16.mxu0 0
    %474 = vmatpush2.bf16.msra.mxu0 0
    %475 = vmatprep.subr.bf16.mxu0 0
    %476 = vmatpush2.bf16.msra.mxu0 0
    %477 = vmatprep.subr.bf16.mxu0 0
    %478 = vmatpush2.bf16.msra.mxu0 0
    %479 = vmatprep.subr.bf16.mxu0 0
    %480 = vmatpush2.bf16.msra.mxu0 0
    %481 = vmatprep.subr.bf16.mxu0 0
    %482 = vmatpush2.bf16.msra.mxu0 0
    %483 = vmatprep.subr.bf16.mxu0 0
    %484 = vmatpush2.bf16.msra.mxu0 0
    %485 = vmatprep.subr.bf16.mxu0 0
    %486 = vmatpush2.bf16.msra.mxu0 0
    %487 = vmatprep.subr.bf16.mxu0 0
    %488 = vmatpush2.bf16.msra.mxu0 0
    %489 = vmatprep.mubr.bf16.mxu0 0
    %490 = vmatmul.mubr.bf16.gmra.mxu0 %v389
    %v491 = vpop.f32.mrf.mxu0
    %v492 = vadd.f32 0.0, %v491
    %v493 = vpop.f32.mrf.mxu0
    %v494 = vadd.f32 0.0, %v493
    %v495 = vpop.f32.mrf.mxu0
    %v496 = vpop.f32.mrf.mxu0
    %497 = vdwg.mxu0
    %498 = vmatprep.subr.bf16.mxu0 0
    %499 = vmatpush1.bf16.msra.mxu0 0
    %500 = vmatprep.subr.bf16.mxu0 %v408
    %501 = vmatpush1.bf16.msra.mxu0 %v405
    %502 = vmatprep.subr.bf16.mxu0 %v328
    %503 = vmatpush1.bf16.msra.mxu0 %v327
    %504 = vmatprep.subr.bf16.mxu0 %v320
    %505 = vmatpush1.bf16.msra.mxu0 %v319
    %506 = vmatprep.subr.bf16.mxu0 %v312
    %507 = vmatpush1.bf16.msra.mxu0 %v311
    %508 = vmatprep.subr.bf16.mxu0 %v304
    %509 = vmatpush1.bf16.msra.mxu0 %v303
    %510 = vmatprep.subr.bf16.mxu0 %v296
    %511 = vmatpush1.bf16.msra.mxu0 %v295
    %512 = vmatprep.subr.bf16.mxu0 %v288
    %513 = vmatpush1.bf16.msra.mxu0 %v287
    %514 = vmatprep.subr.bf16.mxu0 0
    %515 = vmatpush2.bf16.msra.mxu0 0
    %516 = vmatprep.subr.bf16.mxu0 0
    %517 = vmatpush2.bf16.msra.mxu0 0
    %518 = vmatprep.subr.bf16.mxu0 0
    %519 = vmatpush2.bf16.msra.mxu0 0
    %520 = vmatprep.subr.bf16.mxu0 0
    %521 = vmatpush2.bf16.msra.mxu0 0
    %522 = vmatprep.subr.bf16.mxu0 0
    %523 = vmatpush2.bf16.msra.mxu0 0
    %524 = vmatprep.subr.bf16.mxu0 0
    %525 = vmatpush2.bf16.msra.mxu0 0
    %526 = vmatprep.subr.bf16.mxu0 0
    %527 = vmatpush2.bf16.msra.mxu0 0
    %528 = vmatprep.subr.bf16.mxu0 0
    %529 = vmatpush2.bf16.msra.mxu0 0
    %530 = vmatprep.mubr.bf16.mxu0 0
    %531 = vmatmul.mubr.bf16.gmra.mxu0 %v389
    %v532 = vpop.f32.mrf.mxu0
    %v533 = vadd.f32 0.0, %v532
    %v534 = vpop.f32.mrf.mxu0
    %v535 = vadd.f32 0.0, %v534
    %v536 = vpop.f32.mrf.mxu0
    %v537 = vpop.f32.mrf.mxu0
    %538 = vdwg.mxu0
    %539 = vmatprep.subr.bf16.mxu0 0
    %540 = vmatpush1.bf16.msra.mxu0 0
    %541 = vmatprep.subr.bf16.mxu0 %v414
    %542 = vmatpush1.bf16.msra.mxu0 %v411
    %543 = vmatprep.subr.bf16.mxu0 %v330
    %544 = vmatpush1.bf16.msra.mxu0 %v329
    %545 = vmatprep.subr.bf16.mxu0 %v322
    %546 = vmatpush1.bf16.msra.mxu0 %v321
    %547 = vmatprep.subr.bf16.mxu0 %v314
    %548 = vmatpush1.bf16.msra.mxu0 %v313
    %549 = vmatprep.subr.bf16.mxu0 %v306
    %550 = vmatpush1.bf16.msra.mxu0 %v305
    %551 = vmatprep.subr.bf16.mxu0 %v298
    %552 = vmatpush1.bf16.msra.mxu0 %v297
    %553 = vmatprep.subr.bf16.mxu0 %v290
    %554 = vmatpush1.bf16.msra.mxu0 %v289
    %555 = vmatprep.subr.bf16.mxu0 0
    %556 = vmatpush2.bf16.msra.mxu0 0
    %557 = vmatprep.subr.bf16.mxu0 0
    %558 = vmatpush2.bf16.msra.mxu0 0
    %559 = vmatprep.subr.bf16.mxu0 0
    %560 = vmatpush2.bf16.msra.mxu0 0
    %561 = vmatprep.subr.bf16.mxu0 0
    %562 = vmatpush2.bf16.msra.mxu0 0
    %563 = vmatprep.subr.bf16.mxu0 0
    %564 = vmatpush2.bf16.msra.mxu0 0
    %565 = vmatprep.subr.bf16.mxu0 0
    %566 = vmatpush2.bf16.msra.mxu0 0
    %567 = vmatprep.subr.bf16.mxu0 0
    %568 = vmatpush2.bf16.msra.mxu0 0
    %569 = vmatprep.subr.bf16.mxu0 0
    %570 = vmatpush2.bf16.msra.mxu0 0
    %571 = vmatprep.mubr.bf16.mxu0 0
    %572 = vmatmul.mubr.bf16.gmra.mxu0 %v389
    %v573 = vpop.f32.mrf.mxu0
    %v574 = vadd.f32 0.0, %v573
    %v575 = vpop.f32.mrf.mxu0
    %v576 = vadd.f32 0.0, %v575
    %v577 = vpop.f32.mrf.mxu0
    %v578 = vpop.f32.mrf.mxu0
    %579 = vdwg.mxu0
    %v580 = vpack.c.bf16 %v451, %v451
    %v581 = vpack.c.bf16 %v453, %v453
    %v582 = vpack.c.bf16 %v492, %v492
    %v583 = vpack.c.bf16 %v494, %v494
    %v584 = vpack.c.bf16 %v533, %v533
    %v585 = vpack.c.bf16 %v535, %v535
    %v586 = vpack.c.bf16 %v574, %v574
    %v587 = vpack.c.bf16 %v576, %v576
    %v588 = vld [vmem:[#allocation7] sm:$0xff]
    %v590 = vlaneseq
    %v591 = vshrl.u32 %v590, 7
    %v592 = vsub.s32 0, %v591
    %v593 = vrot.slane %v588, %v592
    %v594 = vlaneseq
    %v595 = vshrl.u32 %v594, 7
    %v596 = vsub.s32 1, %v595
    %v597 = vrot.slane %v588, %v596
    %v598 = vlaneseq
    %v599 = vshrl.u32 %v598, 7
    %v600 = vsub.s32 2, %v599
    %v601 = vrot.slane %v588, %v600
    %v602 = vlaneseq
    %v603 = vshrl.u32 %v602, 7
    %v604 = vsub.s32 3, %v603
    %v605 = vrot.slane %v588, %v604
    %v606 = vlaneseq
    %v607 = vshrl.u32 %v606, 7
    %v608 = vsub.s32 4, %v607
    %v609 = vrot.slane %v588, %v608
    %v610 = vlaneseq
    %v611 = vshrl.u32 %v610, 7
    %v612 = vsub.s32 5, %v611
    %v613 = vrot.slane %v588, %v612
    %v614 = vlaneseq
    %v615 = vshrl.u32 %v614, 7
    %v616 = vsub.s32 6, %v615
    %v617 = vrot.slane %v588, %v616
    %v618 = vlaneseq
    %v619 = vshrl.u32 %v618, 7
    %v620 = vsub.s32 7, %v619
    %v621 = vrot.slane %v588, %v620
    %v630 = vpack.c.bf16 %v593, %v593
    %v631 = vpack.c.bf16 %v597, %v597
    %v632 = vpack.c.bf16 %v601, %v601
    %v633 = vpack.c.bf16 %v605, %v605
    %v634 = vpack.c.bf16 %v609, %v609
    %v635 = vpack.c.bf16 %v613, %v613
    %v636 = vpack.c.bf16 %v617, %v617
    %v637 = vpack.c.bf16 %v621, %v621
    %v639 = vpack.i.b16 %v630, %v630
    %v641 = vlaneseq
    %v642 = vshrl.u32 %v641, 7
    %v643 = vsub.s32 0, %v642
    %v644 = vrot.slane %v639, %v643
    %v646 = vpack.i.b16 %v631, %v631
    %v648 = vlaneseq
    %v649 = vshrl.u32 %v648, 7
    %v650 = vsub.s32 0, %v649
    %v651 = vrot.slane %v646, %v650
    %v653 = vpack.i.b16 %v632, %v632
    %v655 = vlaneseq
    %v656 = vshrl.u32 %v655, 7
    %v657 = vsub.s32 0, %v656
    %v658 = vrot.slane %v653, %v657
    %v660 = vpack.i.b16 %v633, %v633
    %v662 = vlaneseq
    %v663 = vshrl.u32 %v662, 7
    %v664 = vsub.s32 0, %v663
    %v665 = vrot.slane %v660, %v664
    %v667 = vpack.i.b16 %v634, %v634
    %v669 = vlaneseq
    %v670 = vshrl.u32 %v669, 7
    %v671 = vsub.s32 0, %v670
    %v672 = vrot.slane %v667, %v671
    %v674 = vpack.i.b16 %v635, %v635
    %v676 = vlaneseq
    %v677 = vshrl.u32 %v676, 7
    %v678 = vsub.s32 0, %v677
    %v679 = vrot.slane %v674, %v678
    %v681 = vpack.i.b16 %v636, %v636
    %v683 = vlaneseq
    %v684 = vshrl.u32 %v683, 7
    %v685 = vsub.s32 0, %v684
    %v686 = vrot.slane %v681, %v685
    %v688 = vpack.i.b16 %v637, %v637
    %v690 = vlaneseq
    %v691 = vshrl.u32 %v690, 7
    %v692 = vsub.s32 0, %v691
    %v693 = vrot.slane %v688, %v692
    %v694 = vadd.bf16 %v580, %v644
    %v695 = vadd.bf16 %v581, %v651
    %v696 = vadd.bf16 %v582, %v658
    %v697 = vadd.bf16 %v583, %v665
    %v698 = vadd.bf16 %v584, %v672
    %v699 = vadd.bf16 %v585, %v679
    %v700 = vadd.bf16 %v586, %v686
    %v701 = vadd.bf16 %v587, %v693
    %v702 = vmax.bf16 %v694, 0
    %v703 = vmax.bf16 %v695, 0
    %v704 = vmax.bf16 %v696, 0
    %v705 = vmax.bf16 %v697, 0
    %v706 = vmax.bf16 %v698, 0
    %v707 = vmax.bf16 %v699, 0
    %v708 = vmax.bf16 %v700, 0
    %v709 = vmax.bf16 %v701, 0
    %v710 = vld [vmem:[#allocation8] sm:$0xf]
    %v711 = vld [vmem:[#allocation8 + $0x4] sm:$0xf]
    %v712 = vld [vmem:[#allocation8 + $0x8] sm:$0xf]
    %v713 = vld [vmem:[#allocation8 + $0xc] sm:$0xf]
    %v714 = vld [vmem:[#allocation8 + $0x10] sm:$0xf]
    %v715 = vld [vmem:[#allocation8 + $0x14] sm:$0xf]
    %v716 = vld [vmem:[#allocation8 + $0x18] sm:$0xf]
    %v717 = vld [vmem:[#allocation8 + $0x1c] sm:$0xf]
    %v718 = vld [vmem:[#allocation8 + $0x20] sm:$0xf]
    %v719 = vld [vmem:[#allocation8 + $0x24] sm:$0xf]
    %v720 = vld [vmem:[#allocation8 + $0x28] sm:$0xf]
    %v721 = vld [vmem:[#allocation8 + $0x2c] sm:$0xf]
    %v722 = vld [vmem:[#allocation8 + $0x30] sm:$0xf]
    %v723 = vld [vmem:[#allocation8 + $0x34] sm:$0xf]
    %v724 = vld [vmem:[#allocation8 + $0x38] sm:$0xf]
    %v725 = vld [vmem:[#allocation8 + $0x3c] sm:$0xf]
    %v726 = vld [vmem:[#allocation8 + $0x40] sm:$0xf]
    %v727 = vld [vmem:[#allocation8 + $0x44] sm:$0xf]
    %v728 = vld [vmem:[#allocation8 + $0x48] sm:$0xf]
    %v729 = vld [vmem:[#allocation8 + $0x4c] sm:$0xf]
    %v730 = vld [vmem:[#allocation8 + $0x50] sm:$0xf]
    %v731 = vld [vmem:[#allocation8 + $0x54] sm:$0xf]
    %v732 = vld [vmem:[#allocation8 + $0x58] sm:$0xf]
    %v733 = vld [vmem:[#allocation8 + $0x5c] sm:$0xf]
    %v734 = vld [vmem:[#allocation8 + $0x60] sm:$0xf]
    %v735 = vld [vmem:[#allocation8 + $0x64] sm:$0xf]
    %v736 = vld [vmem:[#allocation8 + $0x68] sm:$0xf]
    %v737 = vld [vmem:[#allocation8 + $0x6c] sm:$0xf]
    %v738 = vld [vmem:[#allocation8 + $0x70] sm:$0xf]
    %v739 = vld [vmem:[#allocation8 + $0x74] sm:$0xf]
    %v740 = vld [vmem:[#allocation8 + $0x78] sm:$0xf]
    %v741 = vld [vmem:[#allocation8 + $0x7c] sm:$0xf]
    %v742 = vld [vmem:[#allocation8 + $0x80] sm:$0xf]
    %v743 = vld [vmem:[#allocation8 + $0x84] sm:$0xf]
    %v744 = vld [vmem:[#allocation8 + $0x88] sm:$0xf]
    %v745 = vld [vmem:[#allocation8 + $0x8c] sm:$0xf]
    %v746 = vld [vmem:[#allocation8 + $0x90] sm:$0xf]
    %v747 = vld [vmem:[#allocation8 + $0x94] sm:$0xf]
    %v748 = vld [vmem:[#allocation8 + $0x98] sm:$0xf]
    %v749 = vld [vmem:[#allocation8 + $0x9c] sm:$0xf]
    %v750 = vld [vmem:[#allocation8 + $0xa0] sm:$0xf]
    %v751 = vld [vmem:[#allocation8 + $0xa4] sm:$0xf]
    %v752 = vld [vmem:[#allocation8 + $0xa8] sm:$0xf]
    %v753 = vld [vmem:[#allocation8 + $0xac] sm:$0xf]
    %v754 = vld [vmem:[#allocation8 + $0xb0] sm:$0xf]
    %v755 = vld [vmem:[#allocation8 + $0xb4] sm:$0xf]
    %v756 = vld [vmem:[#allocation8 + $0xb8] sm:$0xf]
    %v757 = vld [vmem:[#allocation8 + $0xbc] sm:$0xf]
    %v758 = vld [vmem:[#allocation8 + $0xc0] sm:$0xf]
    %v759 = vld [vmem:[#allocation8 + $0xc4] sm:$0xf]
    %v760 = vld [vmem:[#allocation8 + $0xc8] sm:$0xf]
    %v761 = vld [vmem:[#allocation8 + $0xcc] sm:$0xf]
    %v762 = vld [vmem:[#allocation8 + $0xd0] sm:$0xf]
    %v763 = vld [vmem:[#allocation8 + $0xd4] sm:$0xf]
    %v764 = vld [vmem:[#allocation8 + $0xd8] sm:$0xf]
    %v765 = vld [vmem:[#allocation8 + $0xdc] sm:$0xf]
    %v766 = vld [vmem:[#allocation8 + $0xe0] sm:$0xf]
    %v767 = vld [vmem:[#allocation8 + $0xe4] sm:$0xf]
    %v768 = vld [vmem:[#allocation8 + $0xe8] sm:$0xf]
    %v769 = vld [vmem:[#allocation8 + $0xec] sm:$0xf]
    %v770 = vld [vmem:[#allocation8 + $0xf0] sm:$0xf]
    %v771 = vld [vmem:[#allocation8 + $0xf4] sm:$0xf]
    %v772 = vld [vmem:[#allocation8 + $0xf8] sm:$0xf]
    %v773 = vld [vmem:[#allocation8 + $0xfc] sm:$0xf]
    %v774 = vld [vmem:[#allocation8 + $0x100] sm:$0xf]
    %v775 = vld [vmem:[#allocation8 + $0x104] sm:$0xf]
    %v776 = vld [vmem:[#allocation8 + $0x108] sm:$0xf]
    %v777 = vld [vmem:[#allocation8 + $0x10c] sm:$0xf]
    %v778 = vld [vmem:[#allocation8 + $0x110] sm:$0xf]
    %v779 = vld [vmem:[#allocation8 + $0x114] sm:$0xf]
    %v780 = vld [vmem:[#allocation8 + $0x118] sm:$0xf]
    %v781 = vld [vmem:[#allocation8 + $0x11c] sm:$0xf]
    %v782 = vld [vmem:[#allocation8 + $0x120] sm:$0xf]
    %v783 = vld [vmem:[#allocation8 + $0x124] sm:$0xf]
    %v784 = vld [vmem:[#allocation8 + $0x128] sm:$0xf]
    %v785 = vld [vmem:[#allocation8 + $0x12c] sm:$0xf]
    %v786 = vld [vmem:[#allocation8 + $0x130] sm:$0xf]
    %v787 = vld [vmem:[#allocation8 + $0x134] sm:$0xf]
    %v788 = vld [vmem:[#allocation8 + $0x138] sm:$0xf]
    %v789 = vld [vmem:[#allocation8 + $0x13c] sm:$0xf]
    %v790 = vld [vmem:[#allocation8 + $0x140] sm:$0xf]
    %v791 = vld [vmem:[#allocation8 + $0x144] sm:$0xf]
    %v792 = vld [vmem:[#allocation8 + $0x148] sm:$0xf]
    %v793 = vld [vmem:[#allocation8 + $0x14c] sm:$0xf]
    %v794 = vld [vmem:[#allocation8 + $0x150] sm:$0xf]
    %v795 = vld [vmem:[#allocation8 + $0x154] sm:$0xf]
    %v796 = vld [vmem:[#allocation8 + $0x158] sm:$0xf]
    %v797 = vld [vmem:[#allocation8 + $0x15c] sm:$0xf]
    %v798 = vld [vmem:[#allocation8 + $0x160] sm:$0xf]
    %v799 = vld [vmem:[#allocation8 + $0x164] sm:$0xf]
    %v800 = vld [vmem:[#allocation8 + $0x168] sm:$0xf]
    %v801 = vld [vmem:[#allocation8 + $0x16c] sm:$0xf]
    %v802 = vld [vmem:[#allocation8 + $0x170] sm:$0xf]
    %v803 = vld [vmem:[#allocation8 + $0x174] sm:$0xf]
    %v804 = vld [vmem:[#allocation8 + $0x178] sm:$0xf]
    %v805 = vld [vmem:[#allocation8 + $0x17c] sm:$0xf]
    %v806 = vld [vmem:[#allocation8 + $0x180] sm:$0xf]
    %v807 = vld [vmem:[#allocation8 + $0x184] sm:$0xf]
    %v808 = vld [vmem:[#allocation8 + $0x188] sm:$0xf]
    %v809 = vld [vmem:[#allocation8 + $0x18c] sm:$0xf]
    %v810 = vld [vmem:[#allocation8 + $0x190] sm:$0xf]
    %v811 = vld [vmem:[#allocation8 + $0x194] sm:$0xf]
    %v812 = vld [vmem:[#allocation8 + $0x198] sm:$0xf]
    %v813 = vld [vmem:[#allocation8 + $0x19c] sm:$0xf]
    %v814 = vld [vmem:[#allocation8 + $0x1a0] sm:$0xf]
    %v815 = vld [vmem:[#allocation8 + $0x1a4] sm:$0xf]
    %v816 = vld [vmem:[#allocation8 + $0x1a8] sm:$0xf]
    %v817 = vld [vmem:[#allocation8 + $0x1ac] sm:$0xf]
    %v818 = vld [vmem:[#allocation8 + $0x1b0] sm:$0xf]
    %v819 = vld [vmem:[#allocation8 + $0x1b4] sm:$0xf]
    %v820 = vld [vmem:[#allocation8 + $0x1b8] sm:$0xf]
    %v821 = vld [vmem:[#allocation8 + $0x1bc] sm:$0xf]
    %v822 = vld [vmem:[#allocation8 + $0x1c0] sm:$0xf]
    %v823 = vld [vmem:[#allocation8 + $0x1c4] sm:$0xf]
    %v824 = vld [vmem:[#allocation8 + $0x1c8] sm:$0xf]
    %v825 = vld [vmem:[#allocation8 + $0x1cc] sm:$0xf]
    %v826 = vld [vmem:[#allocation8 + $0x1d0] sm:$0xf]
    %v827 = vld [vmem:[#allocation8 + $0x1d4] sm:$0xf]
    %v828 = vld [vmem:[#allocation8 + $0x1d8] sm:$0xf]
    %v829 = vld [vmem:[#allocation8 + $0x1dc] sm:$0xf]
    %v830 = vld [vmem:[#allocation8 + $0x1e0] sm:$0xf]
    %v831 = vld [vmem:[#allocation8 + $0x1e4] sm:$0xf]
    %v832 = vld [vmem:[#allocation8 + $0x1e8] sm:$0xf]
    %v833 = vld [vmem:[#allocation8 + $0x1ec] sm:$0xf]
    %v834 = vld [vmem:[#allocation8 + $0x1f0] sm:$0xf]
    %v835 = vld [vmem:[#allocation8 + $0x1f4] sm:$0xf]
    %v836 = vld [vmem:[#allocation8 + $0x1f8] sm:$0xf]
    %v837 = vld [vmem:[#allocation8 + $0x1fc] sm:$0xf]
    %v838 = vld [vmem:[%s4] sm:$0x1]
    %v840 = vlaneseq
    %v841 = vshrl.u32 %v840, 7
    %v842 = vsub.s32 0, %v841
    %v843 = vrot.slane %v838, %v842
    %v973 = vunpack.c.l.b16 %v710
    %v974 = vunpack.c.l.b16 %v711
    %v975 = vunpack.c.l.b16 %v712
    %v976 = vunpack.c.l.b16 %v713
    %v977 = vunpack.c.l.b16 %v714
    %v978 = vunpack.c.l.b16 %v715
    %v979 = vunpack.c.l.b16 %v716
    %v980 = vunpack.c.l.b16 %v717
    %v981 = vunpack.c.l.b16 %v718
    %v982 = vunpack.c.l.b16 %v719
    %v983 = vunpack.c.l.b16 %v720
    %v984 = vunpack.c.l.b16 %v721
    %v985 = vunpack.c.l.b16 %v722
    %v986 = vunpack.c.l.b16 %v723
    %v987 = vunpack.c.l.b16 %v724
    %v988 = vunpack.c.l.b16 %v725
    %v989 = vunpack.c.l.b16 %v726
    %v990 = vunpack.c.l.b16 %v727
    %v991 = vunpack.c.l.b16 %v728
    %v992 = vunpack.c.l.b16 %v729
    %v993 = vunpack.c.l.b16 %v730
    %v994 = vunpack.c.l.b16 %v731
    %v995 = vunpack.c.l.b16 %v732
    %v996 = vunpack.c.l.b16 %v733
    %v997 = vunpack.c.l.b16 %v734
    %v998 = vunpack.c.l.b16 %v735
    %v999 = vunpack.c.l.b16 %v736
    %v1000 = vunpack.c.l.b16 %v737
    %v1001 = vunpack.c.l.b16 %v738
    %v1002 = vunpack.c.l.b16 %v739
    %v1003 = vunpack.c.l.b16 %v740
    %v1004 = vunpack.c.l.b16 %v741
    %v1005 = vunpack.c.l.b16 %v742
    %v1006 = vunpack.c.l.b16 %v743
    %v1007 = vunpack.c.l.b16 %v744
    %v1008 = vunpack.c.l.b16 %v745
    %v1009 = vunpack.c.l.b16 %v746
    %v1010 = vunpack.c.l.b16 %v747
    %v1011 = vunpack.c.l.b16 %v748
    %v1012 = vunpack.c.l.b16 %v749
    %v1013 = vunpack.c.l.b16 %v750
    %v1014 = vunpack.c.l.b16 %v751
    %v1015 = vunpack.c.l.b16 %v752
    %v1016 = vunpack.c.l.b16 %v753
    %v1017 = vunpack.c.l.b16 %v754
    %v1018 = vunpack.c.l.b16 %v755
    %v1019 = vunpack.c.l.b16 %v756
    %v1020 = vunpack.c.l.b16 %v757
    %v1021 = vunpack.c.l.b16 %v758
    %v1022 = vunpack.c.l.b16 %v759
    %v1023 = vunpack.c.l.b16 %v760
    %v1024 = vunpack.c.l.b16 %v761
    %v1025 = vunpack.c.l.b16 %v762
    %v1026 = vunpack.c.l.b16 %v763
    %v1027 = vunpack.c.l.b16 %v764
    %v1028 = vunpack.c.l.b16 %v765
    %v1029 = vunpack.c.l.b16 %v766
    %v1030 = vunpack.c.l.b16 %v767
    %v1031 = vunpack.c.l.b16 %v768
    %v1032 = vunpack.c.l.b16 %v769
    %v1033 = vunpack.c.l.b16 %v770
    %v1034 = vunpack.c.l.b16 %v771
    %v1035 = vunpack.c.l.b16 %v772
    %v1036 = vunpack.c.l.b16 %v773
    %v1037 = vunpack.c.l.b16 %v774
    %v1038 = vunpack.c.l.b16 %v775
    %v1039 = vunpack.c.l.b16 %v776
    %v1040 = vunpack.c.l.b16 %v777
    %v1041 = vunpack.c.l.b16 %v778
    %v1042 = vunpack.c.l.b16 %v779
    %v1043 = vunpack.c.l.b16 %v780
    %v1044 = vunpack.c.l.b16 %v781
    %v1045 = vunpack.c.l.b16 %v782
    %v1046 = vunpack.c.l.b16 %v783
    %v1047 = vunpack.c.l.b16 %v784
    %v1048 = vunpack.c.l.b16 %v785
    %v1049 = vunpack.c.l.b16 %v786
    %v1050 = vunpack.c.l.b16 %v787
    %v1051 = vunpack.c.l.b16 %v788
    %v1052 = vunpack.c.l.b16 %v789
    %v1053 = vunpack.c.l.b16 %v790
    %v1054 = vunpack.c.l.b16 %v791
    %v1055 = vunpack.c.l.b16 %v792
    %v1056 = vunpack.c.l.b16 %v793
    %v1057 = vunpack.c.l.b16 %v794
    %v1058 = vunpack.c.l.b16 %v795
    %v1059 = vunpack.c.l.b16 %v796
    %v1060 = vunpack.c.l.b16 %v797
    %v1061 = vunpack.c.l.b16 %v798
    %v1062 = vunpack.c.l.b16 %v799
    %v1063 = vunpack.c.l.b16 %v800
    %v1064 = vunpack.c.l.b16 %v801
    %v1065 = vunpack.c.l.b16 %v802
    %v1066 = vunpack.c.l.b16 %v803
    %v1067 = vunpack.c.l.b16 %v804
    %v1068 = vunpack.c.l.b16 %v805
    %v1069 = vunpack.c.l.b16 %v806
    %v1070 = vunpack.c.l.b16 %v807
    %v1071 = vunpack.c.l.b16 %v808
    %v1072 = vunpack.c.l.b16 %v809
    %v1073 = vunpack.c.l.b16 %v810
    %v1074 = vunpack.c.l.b16 %v811
    %v1075 = vunpack.c.l.b16 %v812
    %v1076 = vunpack.c.l.b16 %v813
    %v1077 = vunpack.c.l.b16 %v814
    %v1078 = vunpack.c.l.b16 %v815
    %v1079 = vunpack.c.l.b16 %v816
    %v1080 = vunpack.c.l.b16 %v817
    %v1081 = vunpack.c.l.b16 %v818
    %v1082 = vunpack.c.l.b16 %v819
    %v1083 = vunpack.c.l.b16 %v820
    %v1084 = vunpack.c.l.b16 %v821
    %v1085 = vunpack.c.l.b16 %v822
    %v1086 = vunpack.c.l.b16 %v823
    %v1087 = vunpack.c.l.b16 %v824
    %v1088 = vunpack.c.l.b16 %v825
    %v1089 = vunpack.c.l.b16 %v826
    %v1090 = vunpack.c.l.b16 %v827
    %v1091 = vunpack.c.l.b16 %v828
    %v1092 = vunpack.c.l.b16 %v829
    %v1093 = vunpack.c.l.b16 %v830
    %v1094 = vunpack.c.l.b16 %v831
    %v1095 = vunpack.c.l.b16 %v832
    %v1096 = vunpack.c.l.b16 %v833
    %v1097 = vunpack.c.l.b16 %v834
    %v1098 = vunpack.c.l.b16 %v835
    %v1099 = vunpack.c.l.b16 %v836
    %v1100 = vunpack.c.l.b16 %v837
    %v1101 = vpack.c.b16 %v974, %v973
    %v1102 = vpack.c.b16 %v976, %v975
    %v1103 = vpack.c.b16 %v978, %v977
    %v1104 = vpack.c.b16 %v980, %v979
    %v1105 = vpack.c.b16 %v982, %v981
    %v1106 = vpack.c.b16 %v984, %v983
    %v1107 = vpack.c.b16 %v986, %v985
    %v1108 = vpack.c.b16 %v988, %v987
    %v1109 = vpack.c.b16 %v990, %v989
    %v1110 = vpack.c.b16 %v992, %v991
    %v1111 = vpack.c.b16 %v994, %v993
    %v1112 = vpack.c.b16 %v996, %v995
    %v1113 = vpack.c.b16 %v998, %v997
    %v1114 = vpack.c.b16 %v1000, %v999
    %v1115 = vpack.c.b16 %v1002, %v1001
    %v1116 = vpack.c.b16 %v1004, %v1003
    %v1117 = vpack.c.b16 %v1006, %v1005
    %v1118 = vpack.c.b16 %v1008, %v1007
    %v1119 = vpack.c.b16 %v1010, %v1009
    %v1120 = vpack.c.b16 %v1012, %v1011
    %v1121 = vpack.c.b16 %v1014, %v1013
    %v1122 = vpack.c.b16 %v1016, %v1015
    %v1123 = vpack.c.b16 %v1018, %v1017
    %v1124 = vpack.c.b16 %v1020, %v1019
    %v1125 = vpack.c.b16 %v1022, %v1021
    %v1126 = vpack.c.b16 %v1024, %v1023
    %v1127 = vpack.c.b16 %v1026, %v1025
    %v1128 = vpack.c.b16 %v1028, %v1027
    %v1129 = vpack.c.b16 %v1030, %v1029
    %v1130 = vpack.c.b16 %v1032, %v1031
    %v1131 = vpack.c.b16 %v1034, %v1033
    %v1132 = vpack.c.b16 %v1036, %v1035
    %v1133 = vpack.c.b16 %v1038, %v1037
    %v1134 = vpack.c.b16 %v1040, %v1039
    %v1135 = vpack.c.b16 %v1042, %v1041
    %v1136 = vpack.c.b16 %v1044, %v1043
    %v1137 = vpack.c.b16 %v1046, %v1045
    %v1138 = vpack.c.b16 %v1048, %v1047
    %v1139 = vpack.c.b16 %v1050, %v1049
    %v1140 = vpack.c.b16 %v1052, %v1051
    %v1141 = vpack.c.b16 %v1054, %v1053
    %v1142 = vpack.c.b16 %v1056, %v1055
    %v1143 = vpack.c.b16 %v1058, %v1057
    %v1144 = vpack.c.b16 %v1060, %v1059
    %v1145 = vpack.c.b16 %v1062, %v1061
    %v1146 = vpack.c.b16 %v1064, %v1063
    %v1147 = vpack.c.b16 %v1066, %v1065
    %v1148 = vpack.c.b16 %v1068, %v1067
    %v1149 = vpack.c.b16 %v1070, %v1069
    %v1150 = vpack.c.b16 %v1072, %v1071
    %v1151 = vpack.c.b16 %v1074, %v1073
    %v1152 = vpack.c.b16 %v1076, %v1075
    %v1153 = vpack.c.b16 %v1078, %v1077
    %v1154 = vpack.c.b16 %v1080, %v1079
    %v1155 = vpack.c.b16 %v1082, %v1081
    %v1156 = vpack.c.b16 %v1084, %v1083
    %v1157 = vpack.c.b16 %v1086, %v1085
    %v1158 = vpack.c.b16 %v1088, %v1087
    %v1159 = vpack.c.b16 %v1090, %v1089
    %v1160 = vpack.c.b16 %v1092, %v1091
    %v1161 = vpack.c.b16 %v1094, %v1093
    %v1162 = vpack.c.b16 %v1096, %v1095
    %v1163 = vpack.c.b16 %v1098, %v1097
    %v1164 = vpack.c.b16 %v1100, %v1099
    %1229 = vmatprep.subr.bf16.mxu0 0
    %1230 = vmatpush1.bf16.msra.mxu0 %v1108
    %1231 = vmatprep.subr.bf16.mxu0 0
    %1232 = vmatpush1.bf16.msra.mxu0 %v1107
    %1233 = vmatprep.subr.bf16.mxu0 0
    %1234 = vmatpush1.bf16.msra.mxu0 %v1106
    %1235 = vmatprep.subr.bf16.mxu0 0
    %1236 = vmatpush1.bf16.msra.mxu0 %v1105
    %1237 = vmatprep.subr.bf16.mxu0 0
    %1238 = vmatpush1.bf16.msra.mxu0 %v1104
    %1239 = vmatprep.subr.bf16.mxu0 0
    %1240 = vmatpush1.bf16.msra.mxu0 %v1103
    %1241 = vmatprep.subr.bf16.mxu0 0
    %1242 = vmatpush1.bf16.msra.mxu0 %v1102
    %1243 = vmatprep.subr.bf16.mxu0 0
    %1244 = vmatpush1.bf16.msra.mxu0 %v1101
    %1245 = vmatprep.subr.bf16.mxu0 0
    %1246 = vmatpush2.bf16.msra.mxu0 %v1116
    %1247 = vmatprep.subr.bf16.mxu0 0
    %1248 = vmatpush2.bf16.msra.mxu0 %v1115
    %1249 = vmatprep.subr.bf16.mxu0 0
    %1250 = vmatpush2.bf16.msra.mxu0 %v1114
    %1251 = vmatprep.subr.bf16.mxu0 0
    %1252 = vmatpush2.bf16.msra.mxu0 %v1113
    %1253 = vmatprep.subr.bf16.mxu0 0
    %1254 = vmatpush2.bf16.msra.mxu0 %v1112
    %1255 = vmatprep.subr.bf16.mxu0 0
    %1256 = vmatpush2.bf16.msra.mxu0 %v1111
    %1257 = vmatprep.subr.bf16.mxu0 0
    %1258 = vmatpush2.bf16.msra.mxu0 %v1110
    %1259 = vmatprep.subr.bf16.mxu0 0
    %1260 = vmatpush2.bf16.msra.mxu0 %v1109
    %1261 = vmatprep.mubr.bf16.mxu0 %v703
    %1262 = vmatmul.mubr.bf16.gmra.mxu0 %v702
    %v1263 = vpop.f32.mrf.mxu0
    %v1264 = vadd.f32 %v843, %v1263
    %v1265 = vpop.f32.mrf.mxu0
    %v1266 = vpop.f32.mrf.mxu0
    %v1267 = vpop.f32.mrf.mxu0
    %1268 = vdwg.mxu0
    %1269 = vmatprep.subr.bf16.mxu0 0
    %1270 = vmatpush1.bf16.msra.mxu0 %v1124
    %1271 = vmatprep.subr.bf16.mxu0 0
    %1272 = vmatpush1.bf16.msra.mxu0 %v1123
    %1273 = vmatprep.subr.bf16.mxu0 0
    %1274 = vmatpush1.bf16.msra.mxu0 %v1122
    %1275 = vmatprep.subr.bf16.mxu0 0
    %1276 = vmatpush1.bf16.msra.mxu0 %v1121
    %1277 = vmatprep.subr.bf16.mxu0 0
    %1278 = vmatpush1.bf16.msra.mxu0 %v1120
    %1279 = vmatprep.subr.bf16.mxu0 0
    %1280 = vmatpush1.bf16.msra.mxu0 %v1119
    %1281 = vmatprep.subr.bf16.mxu0 0
    %1282 = vmatpush1.bf16.msra.mxu0 %v1118
    %1283 = vmatprep.subr.bf16.mxu0 0
    %1284 = vmatpush1.bf16.msra.mxu0 %v1117
    %1285 = vmatprep.subr.bf16.mxu0 0
    %1286 = vmatpush2.bf16.msra.mxu0 %v1132
    %1287 = vmatprep.subr.bf16.mxu0 0
    %1288 = vmatpush2.bf16.msra.mxu0 %v1131
    %1289 = vmatprep.subr.bf16.mxu0 0
    %1290 = vmatpush2.bf16.msra.mxu0 %v1130
    %1291 = vmatprep.subr.bf16.mxu0 0
    %1292 = vmatpush2.bf16.msra.mxu0 %v1129
    %1293 = vmatprep.subr.bf16.mxu0 0
    %1294 = vmatpush2.bf16.msra.mxu0 %v1128
    %1295 = vmatprep.subr.bf16.mxu0 0
    %1296 = vmatpush2.bf16.msra.mxu0 %v1127
    %1297 = vmatprep.subr.bf16.mxu0 0
    %1298 = vmatpush2.bf16.msra.mxu0 %v1126
    %1299 = vmatprep.subr.bf16.mxu0 0
    %1300 = vmatpush2.bf16.msra.mxu0 %v1125
    %1301 = vmatprep.mubr.bf16.mxu0 %v705
    %1302 = vmatmul.mubr.bf16.gmra.mxu0 %v704
    %v1303 = vpop.f32.mrf.mxu0
    %v1304 = vadd.f32 %v1264, %v1303
    %v1305 = vpop.f32.mrf.mxu0
    %v1306 = vpop.f32.mrf.mxu0
    %v1307 = vpop.f32.mrf.mxu0
    %1308 = vdwg.mxu0
    %1309 = vmatprep.subr.bf16.mxu0 0
    %1310 = vmatpush1.bf16.msra.mxu0 %v1140
    %1311 = vmatprep.subr.bf16.mxu0 0
    %1312 = vmatpush1.bf16.msra.mxu0 %v1139
    %1313 = vmatprep.subr.bf16.mxu0 0
    %1314 = vmatpush1.bf16.msra.mxu0 %v1138
    %1315 = vmatprep.subr.bf16.mxu0 0
    %1316 = vmatpush1.bf16.msra.mxu0 %v1137
    %1317 = vmatprep.subr.bf16.mxu0 0
    %1318 = vmatpush1.bf16.msra.mxu0 %v1136
    %1319 = vmatprep.subr.bf16.mxu0 0
    %1320 = vmatpush1.bf16.msra.mxu0 %v1135
    %1321 = vmatprep.subr.bf16.mxu0 0
    %1322 = vmatpush1.bf16.msra.mxu0 %v1134
    %1323 = vmatprep.subr.bf16.mxu0 0
    %1324 = vmatpush1.bf16.msra.mxu0 %v1133
    %1325 = vmatprep.subr.bf16.mxu0 0
    %1326 = vmatpush2.bf16.msra.mxu0 %v1148
    %1327 = vmatprep.subr.bf16.mxu0 0
    %1328 = vmatpush2.bf16.msra.mxu0 %v1147
    %1329 = vmatprep.subr.bf16.mxu0 0
    %1330 = vmatpush2.bf16.msra.mxu0 %v1146
    %1331 = vmatprep.subr.bf16.mxu0 0
    %1332 = vmatpush2.bf16.msra.mxu0 %v1145
    %1333 = vmatprep.subr.bf16.mxu0 0
    %1334 = vmatpush2.bf16.msra.mxu0 %v1144
    %1335 = vmatprep.subr.bf16.mxu0 0
    %1336 = vmatpush2.bf16.msra.mxu0 %v1143
    %1337 = vmatprep.subr.bf16.mxu0 0
    %1338 = vmatpush2.bf16.msra.mxu0 %v1142
    %1339 = vmatprep.subr.bf16.mxu0 0
    %1340 = vmatpush2.bf16.msra.mxu0 %v1141
    %1341 = vmatprep.mubr.bf16.mxu0 %v707
    %1342 = vmatmul.mubr.bf16.gmra.mxu0 %v706
    %v1343 = vpop.f32.mrf.mxu0
    %v1344 = vadd.f32 %v1304, %v1343
    %v1345 = vpop.f32.mrf.mxu0
    %v1346 = vpop.f32.mrf.mxu0
    %v1347 = vpop.f32.mrf.mxu0
    %1348 = vdwg.mxu0
    %1349 = vmatprep.subr.bf16.mxu0 0
    %1350 = vmatpush1.bf16.msra.mxu0 %v1156
    %1351 = vmatprep.subr.bf16.mxu0 0
    %1352 = vmatpush1.bf16.msra.mxu0 %v1155
    %1353 = vmatprep.subr.bf16.mxu0 0
    %1354 = vmatpush1.bf16.msra.mxu0 %v1154
    %1355 = vmatprep.subr.bf16.mxu0 0
    %1356 = vmatpush1.bf16.msra.mxu0 %v1153
    %1357 = vmatprep.subr.bf16.mxu0 0
    %1358 = vmatpush1.bf16.msra.mxu0 %v1152
    %1359 = vmatprep.subr.bf16.mxu0 0
    %1360 = vmatpush1.bf16.msra.mxu0 %v1151
    %1361 = vmatprep.subr.bf16.mxu0 0
    %1362 = vmatpush1.bf16.msra.mxu0 %v1150
    %1363 = vmatprep.subr.bf16.mxu0 0
    %1364 = vmatpush1.bf16.msra.mxu0 %v1149
    %1365 = vmatprep.subr.bf16.mxu0 0
    %1366 = vmatpush2.bf16.msra.mxu0 %v1164
    %1367 = vmatprep.subr.bf16.mxu0 0
    %1368 = vmatpush2.bf16.msra.mxu0 %v1163
    %1369 = vmatprep.subr.bf16.mxu0 0
    %1370 = vmatpush2.bf16.msra.mxu0 %v1162
    %1371 = vmatprep.subr.bf16.mxu0 0
    %1372 = vmatpush2.bf16.msra.mxu0 %v1161
    %1373 = vmatprep.subr.bf16.mxu0 0
    %1374 = vmatpush2.bf16.msra.mxu0 %v1160
    %1375 = vmatprep.subr.bf16.mxu0 0
    %1376 = vmatpush2.bf16.msra.mxu0 %v1159
    %1377 = vmatprep.subr.bf16.mxu0 0
    %1378 = vmatpush2.bf16.msra.mxu0 %v1158
    %1379 = vmatprep.subr.bf16.mxu0 0
    %1380 = vmatpush2.bf16.msra.mxu0 %v1157
    %1381 = vmatprep.mubr.bf16.mxu0 %v709
    %1382 = vmatmul.mubr.bf16.gmra.mxu0 %v708
    %v1383 = vpop.f32.mrf.mxu0
    %v1384 = vadd.f32 %v1344, %v1383
    %v1385 = vpop.f32.mrf.mxu0
    %v1386 = vpop.f32.mrf.mxu0
    %v1387 = vpop.f32.mrf.mxu0
    %1388 = vdwg.mxu0
    %vm1389 = vcmask 9216
    %1390 = vst.msk [vmem:[#allocation10] sm:$0x3] %vm1389, %v1384
    // Predicated region
    $region38: #{tpu_custom_call.1} parent=1 // pred_check
      _
    $region39: #{tpu_custom_call.1} parent=1 // pred_check_branch
      %1392 = sbr.rel (0) target = $region41
    $region40: #{tpu_custom_call.1} parent=1 // pred_region
      %s1394 = ssub.s32 32, 32
      %1395 = vsyncadd [#allocation4], %s1394
      %s1397 = sshll.u32 [#allocation10], 4
      %s1398 = int_to_ptr.vmem [resolvable:$true] %s1397
      %1400 = dma.vmem_to_hbm [thread:$0]  %s1398, 32, %s5, [#allocation4]
    $region41: #{tpu_custom_call.1} parent=1 // pred_fallthru
      _
    // Predicated region
    $region42: #{tpu_custom_call.1} parent=1 // pred_check
      _
    $region43: #{tpu_custom_call.1} parent=1 // pred_check_branch
      %1402 = sbr.rel (0) target = $region45
    $region44: #{tpu_custom_call.1} parent=1 // pred_region
      %1403 = dma.done [#allocation4], 32
    $region45: #{tpu_custom_call.1} parent=1 // pred_fallthru
      _
    %1404 = vsyncpa [#allocation3], 1
    %1405 = vsyncpa [#allocation6], 1
    %1406 = vsyncpa [#allocation9], 1
    %1407 = vsyncpa [#allocation4], 1

</llo_original>
